<compile_context>
chip_gen: v7x
topology: tpu7x:2x2x1
jax: 0.10.0
libtpu: 0.0.40
codegen_flags: <defaults>
</compile_context>

<pallas_src>
import functools
import math

import jax
import jax.numpy as jnp
from jax.experimental import pallas as pl
from jax.experimental.pallas import tpu as pltpu


# --------------------------------------------------------------------------
# Kernel 1: fused QKV projection  (x @ [Wq|Wk|Wv] + [bq|bk|bv])
# --------------------------------------------------------------------------
def _qkv_proj_kernel(x_ref, wqkv_ref, bqkv_ref, q_ref, k_ref, v_ref, *, hidden):
    x = x_ref[...].astype(jnp.bfloat16)                              # [tm, H]
    qkv = jnp.dot(x, wqkv_ref[...],
                  preferred_element_type=jnp.float32) + bqkv_ref[...]
    qkv = qkv.astype(jnp.bfloat16)                                   # [tm, 3H]
    q_ref[...] = qkv[:, :hidden]
    k_ref[...] = qkv[:, hidden:2 * hidden]
    v_ref[...] = qkv[:, 2 * hidden:]


# --------------------------------------------------------------------------
# Kernel 2: attention + output projection + residual + LayerNorm
# --------------------------------------------------------------------------
def _attn_out_kernel(q_ref, k_ref, v_ref, mask_ref, x_ref,
                     wo_ref, bo_ref, gamma_ref, beta_ref, out_ref,
                     *, num_heads, head_dim, eps):
    nh, d = num_heads, head_dim
    mask = mask_ref[...].astype(jnp.float32)                         # [1, S]

    ctx_parts = []
    for h in range(nh):
        lo = h * d
        qh = q_ref[:, lo:lo + d]                                     # [tq, d] bf16
        kh = k_ref[:, lo:lo + d]                                     # [S,  d] bf16
        vh = v_ref[:, lo:lo + d]                                     # [S,  d] bf16
        # scores = q_h @ k_h^T  (1/sqrt(d) already folded into the Q proj)
        s = jax.lax.dot_general(qh, kh, (((1,), (1,)), ((), ())),
                                preferred_element_type=jnp.float32)  # [tq, S]
        s = s + mask
        m = jnp.max(s, axis=-1, keepdims=True)
        p = jnp.exp(s - m)
        l = jnp.sum(p, axis=-1, keepdims=True)
        ctx = jnp.dot(p.astype(jnp.bfloat16), vh,
                      preferred_element_type=jnp.float32)            # [tq, d]
        ctx = ctx * pl.reciprocal(l, approx=True)
        ctx_parts.append(ctx.astype(jnp.bfloat16))

    # Single lane-dense concat(heads) -> one full-width operand for Wo.
    ctx2d = jnp.concatenate(ctx_parts, axis=-1)                      # [tq, H] bf16
    y = jnp.dot(ctx2d, wo_ref[...],
                preferred_element_type=jnp.float32) + bo_ref[...]
    z = y + x_ref[...]                                               # residual (f32)
    # LayerNorm(eps=1e-12), biased variance (matches torch.nn.LayerNorm).
    mean = jnp.mean(z, axis=-1, keepdims=True)
    var = jnp.mean((z - mean) ** 2, axis=-1, keepdims=True)
    out = (z - mean) * jax.lax.rsqrt(var + eps) * gamma_ref[...] + beta_ref[...]
    out_ref[...] = out.astype(out_ref.dtype)


# --------------------------------------------------------------------------
# Wrapper
# --------------------------------------------------------------------------
def _const_spec(arr, grid_rank, single_buffer):
    """Constant (grid-invariant) block: fetched once, kept resident."""
    nd = arr.ndim
    if grid_rank == 1:
        imap = lambda i, _nd=nd: (0,) * _nd
    else:
        imap = lambda b, qi, _nd=nd: (0,) * _nd
    if single_buffer:
        # Drop the useless second pipeline buffer for constants (VMEM saver,
        # matters most on v7x's 64 MiB VMEM).
        return pl.BlockSpec(arr.shape, imap, pipeline_mode=pl.Buffered(1))
    return pl.BlockSpec(arr.shape, imap)


def _forward(x, mask, fused_params, *, num_heads, block_q, block_rows,
             single_buffer_consts):
    B, S, H = x.shape
    if H % num_heads:
        raise ValueError("hidden size must be divisible by num_heads")
    d = H // num_heads
    wqkv, bqkv, wo, bo, gamma, beta = fused_params

    # ---- fused QKV projection: once per token (not once per q-tile) -------
    M = B * S
    tm = min(block_rows, M)
    if M % tm:
        raise ValueError("batch*seq must be divisible by the projection tile")
    x2d = x.reshape(M, H)

    qkv_call = pl.pallas_call(
        functools.partial(_qkv_proj_kernel, hidden=H),
        out_shape=(jax.ShapeDtypeStruct((M, H), jnp.bfloat16),
                   jax.ShapeDtypeStruct((M, H), jnp.bfloat16),
                   jax.ShapeDtypeStruct((M, H), jnp.bfloat16)),
        grid_spec=pltpu.PrefetchScalarGridSpec(
            num_scalar_prefetch=0,
            grid=(M // tm,),
            in_specs=[
                pl.BlockSpec((tm, H), lambda i: (i, 0)),
                _const_spec(wqkv, 1, single_buffer_consts),
                _const_spec(bqkv, 1, single_buffer_consts),
            ],
            out_specs=[pl.BlockSpec((tm, H), lambda i: (i, 0))
                       for _ in range(3)],
        ),
        compiler_params=pltpu.CompilerParams(
            dimension_semantics=("parallel",),
            vmem_limit_bytes=48 * 1024 * 1024),
    )
    q2d, k2d, v2d = qkv_call(x2d, wqkv, bqkv)
    q = q2d.reshape(B, S, H)
    k = k2d.reshape(B, S, H)
    v = v2d.reshape(B, S, H)

    # ---- attention + output projection + residual + LayerNorm -------------
    # block_k == S: full-sequence bf16 K/V per grid step (single-pass softmax,
    # no online-softmax state).  Fine for BERT-style sequence lengths.
    tq = min(block_q, S)
    if S % tq:
        raise ValueError("sequence length must be divisible by block_q")
    n_q = S // tq

    attn_call = pl.pallas_call(
        functools.partial(_attn_out_kernel, num_heads=num_heads,
                          head_dim=d, eps=1e-12),
        out_shape=jax.ShapeDtypeStruct((B, S, H), x.dtype),
        grid_spec=pltpu.PrefetchScalarGridSpec(
            num_scalar_prefetch=0,
            grid=(B, n_q),
            in_specs=[
                pl.BlockSpec((None, tq, H), lambda b, qi: (b, qi, 0)),  # Q tile
                pl.BlockSpec((None, S, H), lambda b, qi: (b, 0, 0)),    # K (full)
                pl.BlockSpec((None, S, H), lambda b, qi: (b, 0, 0)),    # V (full)
                pl.BlockSpec((None, 1, S), lambda b, qi: (b, 0, 0)),    # mask
                pl.BlockSpec((None, tq, H), lambda b, qi: (b, qi, 0)),  # residual x
                _const_spec(wo, 2, single_buffer_consts),
                _const_spec(bo, 2, single_buffer_consts),
                _const_spec(gamma, 2, single_buffer_consts),
                _const_spec(beta, 2, single_buffer_consts),
            ],
            out_specs=pl.BlockSpec((None, tq, H), lambda b, qi: (b, qi, 0)),
        ),
        compiler_params=pltpu.CompilerParams(
            # Both axes independent -> megacore-shardable (B * n_q >= 2 keeps
            # both v7x TensorCores fed for any realistic batch).
            dimension_semantics=("parallel", "parallel"),
            vmem_limit_bytes=48 * 1024 * 1024),
    )
    return attn_call(q, k, v, mask, x, wo, bo, gamma, beta)


def bert_lang_attention(x, mask, fused_params, *, num_heads,
                        block_q=256, block_rows=256):
    """x: [B, S, H] f32; mask: [B, 1, S] additive attention mask."""
    try:
        return _forward(x, mask, fused_params, num_heads=num_heads,
                        block_q=block_q, block_rows=block_rows,
                        single_buffer_consts=True)
    except Exception:
        # Fallback if pl.Buffered(1) on constant blocks is not supported by
        # this jax version; semantics are identical, only VMEM usage differs.
        return _forward(x, mask, fused_params, num_heads=num_heads,
                        block_q=block_q, block_rows=block_rows,
                        single_buffer_consts=False)


# --------------------------------------------------------------------------
# Parameter packing + pure-JAX reference
# --------------------------------------------------------------------------
def make_params(key, hidden, num_heads):
    """Deterministic init. Returns (raw f32 params, kernel-prepped params)."""
    d = hidden // num_heads
    keys = jax.random.split(key, 8)
    std = 0.02

    def lin(k):  # torch nn.Linear weight is [out, in]; kernel uses x @ W.T form
        return jax.random.normal(k, (hidden, hidden), jnp.float32) * std

    Wq, Wk, Wv, Wo = lin(keys[0]), lin(keys[1]), lin(keys[2]), lin(keys[3])
    bq = jax.random.normal(keys[4], (hidden,), jnp.float32) * std
    bk = jax.random.normal(keys[5], (hidden,), jnp.float32) * std
    bv = jax.random.normal(keys[6], (hidden,), jnp.float32) * std
    bo = jax.random.normal(keys[7], (hidden,), jnp.float32) * std
    gamma = jnp.ones((hidden,), jnp.float32)
    beta = jnp.zeros((hidden,), jnp.float32)

    raw = (Wq, bq, Wk, bk, Wv, bv, Wo, bo, gamma, beta)

    scale = 1.0 / math.sqrt(d)    # folded into the Q projection
    wqkv = jnp.concatenate([Wq.T * scale, Wk.T, Wv.T],
                           axis=1).astype(jnp.bfloat16)        # [H, 3H]
    bqkv = jnp.concatenate([bq * scale, bk, bv]).reshape(1, 3 * hidden)  # f32
    fused = (wqkv, bqkv,
             Wo.T.astype(jnp.bfloat16), bo.reshape(1, hidden),
             gamma.reshape(1, hidden), beta.reshape(1, hidden))
    return raw, fused


def reference(x, mask, raw, *, num_heads):
    """Pure-JAX f32 reference mirroring the PyTorch forward (eval mode)."""
    Wq, bq, Wk, bk, Wv, bv, Wo, bo, gamma, beta = raw
    B, S, H = x.shape
    d = H // num_heads

    def heads(t):  # [B,S,H] -> [B,nh,S,d]
        return t.reshape(B, S, num_heads, d).transpose(0, 2, 1, 3)

    q = heads(x @ Wq.T + bq)
    k = heads(x @ Wk.T + bk)
    v = heads(x @ Wv.T + bv)
    scores = jnp.einsum('bhqd,bhkd->bhqk', q, k) / math.sqrt(d)
    scores = scores + mask[:, None, :, :]
    probs = jax.nn.softmax(scores, axis=-1)
    ctx = jnp.einsum('bhqk,bhkd->bhqd', probs, v)
    ctx = ctx.transpose(0, 2, 1, 3).reshape(B, S, H)
    y = ctx @ Wo.T + bo
    z = y + x
    mean = z.mean(-1, keepdims=True)
    var = ((z - mean) ** 2).mean(-1, keepdims=True)
    return (z - mean) / jnp.sqrt(var + 1e-12) * gamma + beta


if __name__ == "__main__":
    B, S, H, NH = 2, 8, 32, 4

    key = jax.random.PRNGKey(0)
    kx, km, kp = jax.random.split(key, 3)
    x = jax.random.normal(kx, (B, S, H), jnp.float32)
    # BERT-style additive mask: 0 for attended positions, -10000 for padding.
    keep = (jax.random.uniform(km, (B, 1, S)) > 0.2).astype(jnp.float32)
    mask = (1.0 - keep) * -10000.0

    raw_params, fused_params = make_params(kp, H, NH)

    out = bert_lang_attention(x, mask, fused_params, num_heads=NH)
    out = jax.block_until_ready(out)

    ref = reference(x, mask, raw_params, num_heads=NH)
    assert out.shape == (B, S, H)
    err = float(jnp.max(jnp.abs(out - ref)))
    # bf16 matmuls + approx reciprocal -> relaxed tolerance vs. f32 reference.
    assert err < 2e-2, f"max abs err {err}"

    print("KERNEL_OK")
</pallas_src>

<mosaic_0001>
module attributes {stable_mosaic.version = 11 : i64} {
  func.func @_qkv_proj_kernel(%arg0: i32, %arg1: memref<16x32xf32, #tpu.memory_space<vmem>>, %arg2: memref<32x96xbf16, #tpu.memory_space<vmem>>, %arg3: memref<1x96xf32, #tpu.memory_space<vmem>>, %arg4: memref<16x32xbf16, #tpu.memory_space<vmem>>, %arg5: memref<16x32xbf16, #tpu.memory_space<vmem>>, %arg6: memref<16x32xbf16, #tpu.memory_space<vmem>>) attributes {dimension_semantics = [#tpu.dimension_semantics<parallel>], iteration_bounds = array<i64: 1>, scalar_prefetch = 0 : i64, scratch_operands = 0 : i64, tpu.core_type = #tpu.core_type<tc>, window_params = [{transform_indices = @transform_0, window_bounds = array<i64: 16, 32>}, {pipeline_mode = #tpu.pipeline_mode<synchronous>, transform_indices = @transform_1, window_bounds = array<i64: 32, 96>}, {pipeline_mode = #tpu.pipeline_mode<synchronous>, transform_indices = @transform_2, window_bounds = array<i64: 1, 96>}, {transform_indices = @transform_3, window_bounds = array<i64: 16, 32>}, {transform_indices = @transform_4, window_bounds = array<i64: 16, 32>}, {transform_indices = @transform_5, window_bounds = array<i64: 16, 32>}]} {
    %c0 = arith.constant 0 : index
    %c0_0 = arith.constant 0 : index
    %0 = vector.load %arg1[%c0, %c0_0] : memref<16x32xf32, #tpu.memory_space<vmem>>, vector<16x32xf32>
    %1 = arith.truncf %0 : vector<16x32xf32> to vector<16x32xbf16>
    %c0_1 = arith.constant 0 : index
    %c0_2 = arith.constant 0 : index
    %2 = vector.load %arg2[%c0_1, %c0_2] : memref<32x96xbf16, #tpu.memory_space<vmem>>, vector<32x96xbf16>
    %cst = arith.constant dense<0.000000e+00> : vector<16x96xf32>
    %3 = tpu.matmul %1, %2, %cst {dimension_numbers = #tpu.dot_dimension_numbers<[1], [0], [0], [1], [0, 0, 1, 1], [], []>} : vector<16x32xbf16>, vector<32x96xbf16>, vector<16x96xf32> -> vector<16x96xf32>
    %c0_3 = arith.constant 0 : index
    %c0_4 = arith.constant 0 : index
    %4 = vector.load %arg3[%c0_3, %c0_4] : memref<1x96xf32, #tpu.memory_space<vmem>>, vector<1x96xf32>
    %5 = vector.broadcast %4 : vector<1x96xf32> to vector<16x96xf32>
    %6 = arith.addf %3, %5 : vector<16x96xf32>
    %7 = arith.truncf %6 : vector<16x96xf32> to vector<16x96xbf16>
    %8 = vector.extract_strided_slice %7 {offsets = [0, 0], sizes = [16, 32], strides = [1, 1]} : vector<16x96xbf16> to vector<16x32xbf16>
    %c0_5 = arith.constant 0 : index
    %c0_6 = arith.constant 0 : index
    %9 = vector.load %arg4[%c0_5, %c0_6] : memref<16x32xbf16, #tpu.memory_space<vmem>>, vector<16x32xbf16>
    tpu.vector_store %arg4[%c0_5, %c0_6], %8 {strides = array<i32>} : memref<16x32xbf16, #tpu.memory_space<vmem>>, vector<16x32xbf16>,
    %10 = vector.extract_strided_slice %7 {offsets = [0, 32], sizes = [16, 32], strides = [1, 1]} : vector<16x96xbf16> to vector<16x32xbf16>
    %c0_7 = arith.constant 0 : index
    %c0_8 = arith.constant 0 : index
    %11 = vector.load %arg5[%c0_7, %c0_8] : memref<16x32xbf16, #tpu.memory_space<vmem>>, vector<16x32xbf16>
    tpu.vector_store %arg5[%c0_7, %c0_8], %10 {strides = array<i32>} : memref<16x32xbf16, #tpu.memory_space<vmem>>, vector<16x32xbf16>,
    %12 = vector.extract_strided_slice %7 {offsets = [0, 64], sizes = [16, 32], strides = [1, 1]} : vector<16x96xbf16> to vector<16x32xbf16>
    %c0_9 = arith.constant 0 : index
    %c0_10 = arith.constant 0 : index
    %13 = vector.load %arg6[%c0_9, %c0_10] : memref<16x32xbf16, #tpu.memory_space<vmem>>, vector<16x32xbf16>
    tpu.vector_store %arg6[%c0_9, %c0_10], %12 {strides = array<i32>} : memref<16x32xbf16, #tpu.memory_space<vmem>>, vector<16x32xbf16>,
    return
  }
  func.func @transform_0(%arg0: i32) -> (i32, i32) {
    %c0_i32 = arith.constant 0 : i32
    %c0_i32_0 = arith.constant 0 : i32
    return %arg0, %c0_i32 : i32, i32
  }
  func.func @transform_1(%arg0: i32) -> (i32, i32) {
    %c0_i32 = arith.constant 0 : i32
    %c0_i32_0 = arith.constant 0 : i32
    %c0_i32_1 = arith.constant 0 : i32
    return %c0_i32, %c0_i32_0 : i32, i32
  }
  func.func @transform_2(%arg0: i32) -> (i32, i32) {
    %c0_i32 = arith.constant 0 : i32
    %c0_i32_0 = arith.constant 0 : i32
    %c0_i32_1 = arith.constant 0 : i32
    return %c0_i32, %c0_i32_0 : i32, i32
  }
  func.func @transform_3(%arg0: i32) -> (i32, i32) {
    %c0_i32 = arith.constant 0 : i32
    %c0_i32_0 = arith.constant 0 : i32
    return %arg0, %c0_i32 : i32, i32
  }
  func.func @transform_4(%arg0: i32) -> (i32, i32) {
    %c0_i32 = arith.constant 0 : i32
    %c0_i32_0 = arith.constant 0 : i32
    return %arg0, %c0_i32 : i32, i32
  }
  func.func @transform_5(%arg0: i32) -> (i32, i32) {
    %c0_i32 = arith.constant 0 : i32
    %c0_i32_0 = arith.constant 0 : i32
    return %arg0, %c0_i32 : i32, i32
  }
}

module attributes {stable_mosaic.version = 11 : i64} {
  func.func @_qkv_proj_kernel(%arg0: i32, %arg1: memref<16x32xf32, #tpu.memory_space<vmem>>, %arg2: memref<32x96xbf16, #tpu.memory_space<vmem>>, %arg3: memref<1x96xf32, #tpu.memory_space<vmem>>, %arg4: memref<16x32xbf16, #tpu.memory_space<vmem>>, %arg5: memref<16x32xbf16, #tpu.memory_space<vmem>>, %arg6: memref<16x32xbf16, #tpu.memory_space<vmem>>) attributes {dimension_semantics = [#tpu.dimension_semantics<parallel>], iteration_bounds = array<i64: 1>, scalar_prefetch = 0 : i64, scratch_operands = 0 : i64, tpu.core_type = #tpu.core_type<tc>, window_params = [{transform_indices = @transform_0, window_bounds = array<i64: 16, 32>}, {pipeline_mode = #tpu.pipeline_mode<synchronous>, transform_indices = @transform_1, window_bounds = array<i64: 32, 96>}, {pipeline_mode = #tpu.pipeline_mode<synchronous>, transform_indices = @transform_2, window_bounds = array<i64: 1, 96>}, {transform_indices = @transform_3, window_bounds = array<i64: 16, 32>}, {transform_indices = @transform_4, window_bounds = array<i64: 16, 32>}, {transform_indices = @transform_5, window_bounds = array<i64: 16, 32>}]} {
    %c0 = arith.constant 0 : index
    %c0_0 = arith.constant 0 : index
    %0 = vector.load %arg1[%c0, %c0_0] : memref<16x32xf32, #tpu.memory_space<vmem>>, vector<16x32xf32>
    %1 = arith.truncf %0 : vector<16x32xf32> to vector<16x32xbf16>
    %c0_1 = arith.constant 0 : index
    %c0_2 = arith.constant 0 : index
    %2 = vector.load %arg2[%c0_1, %c0_2] : memref<32x96xbf16, #tpu.memory_space<vmem>>, vector<32x96xbf16>
    %cst = arith.constant dense<0.000000e+00> : vector<16x96xf32>
    %3 = tpu.matmul %1, %2, %cst {dimension_numbers = #tpu.dot_dimension_numbers<[1], [0], [0], [1], [0, 0, 1, 1], [], []>} : vector<16x32xbf16>, vector<32x96xbf16>, vector<16x96xf32> -> vector<16x96xf32>
    %c0_3 = arith.constant 0 : index
    %c0_4 = arith.constant 0 : index
    %4 = vector.load %arg3[%c0_3, %c0_4] : memref<1x96xf32, #tpu.memory_space<vmem>>, vector<1x96xf32>
    %5 = vector.broadcast %4 : vector<1x96xf32> to vector<16x96xf32>
    %6 = arith.addf %3, %5 : vector<16x96xf32>
    %7 = arith.truncf %6 : vector<16x96xf32> to vector<16x96xbf16>
    %8 = vector.extract_strided_slice %7 {offsets = [0, 0], sizes = [16, 32], strides = [1, 1]} : vector<16x96xbf16> to vector<16x32xbf16>
    %c0_5 = arith.constant 0 : index
    %c0_6 = arith.constant 0 : index
    %9 = vector.load %arg4[%c0_5, %c0_6] : memref<16x32xbf16, #tpu.memory_space<vmem>>, vector<16x32xbf16>
    tpu.vector_store %arg4[%c0_5, %c0_6], %8 {strides = array<i32>} : memref<16x32xbf16, #tpu.memory_space<vmem>>, vector<16x32xbf16>,
    %10 = vector.extract_strided_slice %7 {offsets = [0, 32], sizes = [16, 32], strides = [1, 1]} : vector<16x96xbf16> to vector<16x32xbf16>
    %c0_7 = arith.constant 0 : index
    %c0_8 = arith.constant 0 : index
    %11 = vector.load %arg5[%c0_7, %c0_8] : memref<16x32xbf16, #tpu.memory_space<vmem>>, vector<16x32xbf16>
    tpu.vector_store %arg5[%c0_7, %c0_8], %10 {strides = array<i32>} : memref<16x32xbf16, #tpu.memory_space<vmem>>, vector<16x32xbf16>,
    %12 = vector.extract_strided_slice %7 {offsets = [0, 64], sizes = [16, 32], strides = [1, 1]} : vector<16x96xbf16> to vector<16x32xbf16>
    %c0_9 = arith.constant 0 : index
    %c0_10 = arith.constant 0 : index
    %13 = vector.load %arg6[%c0_9, %c0_10] : memref<16x32xbf16, #tpu.memory_space<vmem>>, vector<16x32xbf16>
    tpu.vector_store %arg6[%c0_9, %c0_10], %12 {strides = array<i32>} : memref<16x32xbf16, #tpu.memory_space<vmem>>, vector<16x32xbf16>,
    return
  }
  func.func @transform_0(%arg0: i32) -> (i32, i32) {
    %c0_i32 = arith.constant 0 : i32
    %c0_i32_0 = arith.constant 0 : i32
    return %arg0, %c0_i32 : i32, i32
  }
  func.func @transform_1(%arg0: i32) -> (i32, i32) {
    %c0_i32 = arith.constant 0 : i32
    %c0_i32_0 = arith.constant 0 : i32
    %c0_i32_1 = arith.constant 0 : i32
    return %c0_i32, %c0_i32_0 : i32, i32
  }
  func.func @transform_2(%arg0: i32) -> (i32, i32) {
    %c0_i32 = arith.constant 0 : i32
    %c0_i32_0 = arith.constant 0 : i32
    %c0_i32_1 = arith.constant 0 : i32
    return %c0_i32, %c0_i32_0 : i32, i32
  }
  func.func @transform_3(%arg0: i32) -> (i32, i32) {
    %c0_i32 = arith.constant 0 : i32
    %c0_i32_0 = arith.constant 0 : i32
    return %arg0, %c0_i32 : i32, i32
  }
  func.func @transform_4(%arg0: i32) -> (i32, i32) {
    %c0_i32 = arith.constant 0 : i32
    %c0_i32_0 = arith.constant 0 : i32
    return %arg0, %c0_i32 : i32, i32
  }
  func.func @transform_5(%arg0: i32) -> (i32, i32) {
    %c0_i32 = arith.constant 0 : i32
    %c0_i32_0 = arith.constant 0 : i32
    return %arg0, %c0_i32 : i32, i32
  }
}

</mosaic_0001>

<llo_original>
// kernel: tpu_custom_call.1
$region0: #{tpu_custom_call.1}
  #allocation0 [shape = 'u32[]', space=smem, size = 0x4, offset = 0x4, fixed_abs, tag = 'smem constant byte address 0x4 - core index']
  #allocation1 [shape = 'u32[144,128]{1,0:T(1,128)}', space=vmem, size = 0x12000, scoped, tag = 'internal scratch']
  %s0 = inlined_call_operand.hbm [shape: f32[16,32], index: 0, kind: input, shape index: {}]
  %s1 = inlined_call_operand.hbm [shape: bf16[32,96], index: 1, kind: input, shape index: {}]
  %s2 = inlined_call_operand.vmem [shape: f32[1,96], index: 2, kind: input, shape index: {}]
  %s3 = inlined_call_operand.hbm [shape: bf16[16,32], index: 3, kind: output, shape index: {0}]
  %s4 = inlined_call_operand.hbm [shape: bf16[16,32], index: 4, kind: output, shape index: {1}]
  %s5 = inlined_call_operand.hbm [shape: bf16[16,32], index: 5, kind: output, shape index: {2}]
  %6 = xla_tuple %s3, %s4, %s5
  %s7 = sld [smem:[#allocation0]]
  $region46: #{tpu_custom_call.1} parent=0
    _
  %s9 = ssub.s32 1, %s7
  %s10 = scalar_select 0, %s9, %s7
  $region1: #{tpu_custom_call.1} parent=0
    #allocation2 [shape = 'u8[8192]{0}', space=vmem, size = 0x2000, scoped, tag = 'input window, operand 0, single buffered']
    #allocation3 [shape = 's32[1]{0}', space=sflag, size = 0x4, scoped, tag = 'scoped memory for tpu_custom_call.1']
    #allocation4 [shape = 's32[1]{0}', space=sflag, size = 0x4, scoped, tag = 'scoped memory for tpu_custom_call.1']
    #allocation5 [shape = 'u8[8192]{0}', space=vmem, size = 0x2000, scoped, tag = 'input window, operand 1, single buffered']
    #allocation6 [shape = 's32[1]{0}', space=sflag, size = 0x4, scoped, tag = 'scoped memory for tpu_custom_call.1']
    #allocation7 [shape = 'u8[4096]{0}', space=vmem, size = 0x1000, scoped, tag = 'output window, operand 0, single buffered']
    #allocation8 [shape = 'u8[4096]{0}', space=vmem, size = 0x1000, scoped, tag = 'output window, operand 1, single buffered']
    #allocation9 [shape = 's32[1]{0}', space=sflag, size = 0x4, scoped, tag = 'scoped memory for tpu_custom_call.1']
    #allocation10 [shape = 'u8[4096]{0}', space=vmem, size = 0x1000, scoped, tag = 'output window, operand 2, single buffered']
    %11 = vsyncpa [#allocation3], 0
    %12 = vsyncpa [#allocation6], 0
    %13 = vsyncpa [#allocation4], 0
    %14 = vsyncpa [#allocation9], 0
    // Predicated region
    $region2: #{tpu_custom_call.1} parent=1 // pred_check
      _
    $region3: #{tpu_custom_call.1} parent=1 // pred_check_branch
      %16 = sbr.rel (0) target = $region5
    $region4: #{tpu_custom_call.1} parent=1 // pred_region
      %s18 = ssub.s32 256, 256
      %19 = vsyncadd [#allocation3], %s18
      %s20 = sshll.u32 [#allocation2], 4
      %s21 = int_to_ptr.vmem [resolvable:$true] %s20
      %26 = dma.hbm_to_vmem [thread:$0]  %s0, 256, %s21, [#allocation3], 128, 128, 8
    $region5: #{tpu_custom_call.1} parent=1 // pred_fallthru
      _
    // Predicated region
    $region6: #{tpu_custom_call.1} parent=1 // pred_check
      _
    $region7: #{tpu_custom_call.1} parent=1 // pred_check_branch
      %28 = sbr.rel (0) target = $region9
    $region8: #{tpu_custom_call.1} parent=1 // pred_region
      %s30 = ssub.s32 256, 256
      %31 = vsyncadd [#allocation6], %s30
      %s32 = sshll.u32 [#allocation5], 4
      %s33 = int_to_ptr.vmem [resolvable:$true] %s32
      %38 = dma.hbm_to_vmem [thread:$0]  %s1, 256, %s33, [#allocation6], 64, 64, 4
    $region9: #{tpu_custom_call.1} parent=1 // pred_fallthru
      _
    // Predicated region
    $region10: #{tpu_custom_call.1} parent=1 // pred_check
      _
    $region11: #{tpu_custom_call.1} parent=1 // pred_check_branch
      %40 = sbr.rel (0) target = $region13
    $region12: #{tpu_custom_call.1} parent=1 // pred_region
      _
    $region13: #{tpu_custom_call.1} parent=1 // pred_fallthru
      _
    // Predicated region
    $region14: #{tpu_custom_call.1} parent=1 // pred_check
      _
    $region15: #{tpu_custom_call.1} parent=1 // pred_check_branch
      %42 = sbr.rel (0) target = $region17
    $region16: #{tpu_custom_call.1} parent=1 // pred_region
      %43 = dma.done [#allocation3], 256
    $region17: #{tpu_custom_call.1} parent=1 // pred_fallthru
      _
    // Predicated region
    $region18: #{tpu_custom_call.1} parent=1 // pred_check
      _
    $region19: #{tpu_custom_call.1} parent=1 // pred_check_branch
      %45 = sbr.rel (0) target = $region21
    $region20: #{tpu_custom_call.1} parent=1 // pred_region
      %46 = dma.done [#allocation6], 256
    $region21: #{tpu_custom_call.1} parent=1 // pred_fallthru
      _
    %v48 = vld [vmem:[#allocation2] sm:$0xff]
    %v49 = vld [vmem:[#allocation2 + $0x8] sm:$0xff]
    %v50 = vpack.c.bf16 %v49, %v48
    %v51 = vld [vmem:[#allocation5] sm:$0xf]
    %v52 = vld [vmem:[#allocation5 + $0x4] sm:$0xf]
    %v53 = vld [vmem:[#allocation5 + $0x8] sm:$0xf]
    %v54 = vld [vmem:[#allocation5 + $0xc] sm:$0xf]
    %v55 = vld [vmem:[%s2] sm:$0x1]
    %v57 = vlaneseq
    %v58 = vshrl.u32 %v57, 7
    %v59 = vsub.s32 0, %v58
    %v60 = vrot.slane %v55, %v59
    %v66 = vunpack.c.l.b16 %v51
    %v67 = vunpack.c.l.b16 %v52
    %v68 = vunpack.c.l.b16 %v53
    %v69 = vunpack.c.l.b16 %v54
    %v70 = vpack.c.b16 %v67, %v66
    %v71 = vpack.c.b16 %v69, %v68
    %vm74 = vcmask 261120
    %v76 = vsel %vm74, %v50, 0
    %78 = vmatprep.subr.bf16.mxu0 0
    %79 = vmatpush1.bf16.msra.mxu0 %v70
    %80 = vmatprep.subr.bf16.mxu0 0
    %81 = vmatpush1.bf16.msra.mxu0 %v71
    %82 = vmatprep.subr.bf16.mxu0 0
    %83 = vmatpush1.bf16.msra.mxu0 0
    %84 = vmatprep.subr.bf16.mxu0 0
    %85 = vmatpush1.bf16.msra.mxu0 0
    %86 = vmatprep.subr.bf16.mxu0 0
    %87 = vmatpush1.bf16.msra.mxu0 0
    %88 = vmatprep.subr.bf16.mxu0 0
    %89 = vmatpush1.bf16.msra.mxu0 0
    %90 = vmatprep.subr.bf16.mxu0 0
    %91 = vmatpush1.bf16.msra.mxu0 0
    %92 = vmatprep.subr.bf16.mxu0 0
    %93 = vmatpush1.bf16.msra.mxu0 0
    %94 = vmatprep.subr.bf16.mxu0 0
    %95 = vmatpush1.bf16.msra.mxu0 0
    %96 = vmatprep.subr.bf16.mxu0 0
    %97 = vmatpush1.bf16.msra.mxu0 0
    %98 = vmatprep.subr.bf16.mxu0 0
    %99 = vmatpush1.bf16.msra.mxu0 0
    %100 = vmatprep.subr.bf16.mxu0 0
    %101 = vmatpush1.bf16.msra.mxu0 0
    %102 = vmatprep.subr.bf16.mxu0 0
    %103 = vmatpush1.bf16.msra.mxu0 0
    %104 = vmatprep.subr.bf16.mxu0 0
    %105 = vmatpush1.bf16.msra.mxu0 0
    %106 = vmatprep.subr.bf16.mxu0 0
    %107 = vmatpush1.bf16.msra.mxu0 0
    %108 = vmatprep.subr.bf16.mxu0 0
    %109 = vmatpush1.bf16.msra.mxu0 0
    %110 = vmatprep.mubr.bf16.mxu0 0
    %111 = vmatmul.mubr.bf16.gmra.mrb[0].mxu0 %v76
    %v112 = vpop.f32.mrb[0].mxu0
    %v113 = vadd.f32 %v60, %v112
    %v114 = vpop.f32.mrb[0].mxu0
    %v115 = vpop.f32.mrb[0].mxu0
    %v116 = vadd.f32 %v60, %v115
    %v117 = vpop.f32.mrb[0].mxu0
    %118 = vdwg.mxu0
    %v119 = vpack.c.bf16 %v116, %v113
    %v121 = vunpack.c.l.b16 %v119
    %v122 = vunpack.c.h.b16 %v119
    %v123 = vpack.c.b16 %v121, %v121
    %v124 = vpack.c.b16 %v122, %v122
    %vm127 = vcmask 257024
    %128 = vst.msk [vmem:[#allocation7] sm:$0xf] %vm127, %v123
    %129 = vst.msk [vmem:[#allocation7 + $0x4] sm:$0xf] %vm127, %v124
    %130 = vrot.lane.b32.xlu0 %v123, 96
    %v131 = vpop.permute.xlu0 %130
    %132 = vrot.lane.b32.xlu0 %v124, 96
    %v133 = vpop.permute.xlu0 %132
    %136 = vst.msk [vmem:[#allocation8] sm:$0xf] %vm127, %v131
    %137 = vst.msk [vmem:[#allocation8 + $0x4] sm:$0xf] %vm127, %v133
    %138 = vrot.lane.b32.xlu0 %v123, 64
    %v139 = vpop.permute.xlu0 %138
    %140 = vrot.lane.b32.xlu0 %v124, 64
    %v141 = vpop.permute.xlu0 %140
    %144 = vst.msk [vmem:[#allocation10] sm:$0xf] %vm127, %v139
    %145 = vst.msk [vmem:[#allocation10 + $0x4] sm:$0xf] %vm127, %v141
    // Predicated region
    $region22: #{tpu_custom_call.1} parent=1 // pred_check
      _
    $region23: #{tpu_custom_call.1} parent=1 // pred_check_branch
      %147 = sbr.rel (0) target = $region25
    $region24: #{tpu_custom_call.1} parent=1 // pred_region
      %s149 = ssub.s32 128, 128
      %150 = vsyncadd [#allocation4], %s149
      %s151 = sshll.u32 [#allocation7], 4
      %s152 = int_to_ptr.vmem [resolvable:$true] %s151
      %157 = dma.vmem_to_hbm [thread:$0]  %s152, 128, %s3, [#allocation4], 64, 64, 4
    $region25: #{tpu_custom_call.1} parent=1 // pred_fallthru
      _
    // Predicated region
    $region26: #{tpu_custom_call.1} parent=1 // pred_check
      _
    $region27: #{tpu_custom_call.1} parent=1 // pred_check_branch
      %159 = sbr.rel (0) target = $region29
    $region28: #{tpu_custom_call.1} parent=1 // pred_region
      %s161 = ssub.s32 128, 128
      %162 = vsyncadd [#allocation9], %s161
      %s163 = sshll.u32 [#allocation8], 4
      %s164 = int_to_ptr.vmem [resolvable:$true] %s163
      %169 = dma.vmem_to_hbm [thread:$0]  %s164, 128, %s4, [#allocation9], 64, 64, 4
    $region29: #{tpu_custom_call.1} parent=1 // pred_fallthru
      _
    // Predicated region
    $region30: #{tpu_custom_call.1} parent=1 // pred_check
      _
    $region31: #{tpu_custom_call.1} parent=1 // pred_check_branch
      %171 = sbr.rel (0) target = $region33
    $region32: #{tpu_custom_call.1} parent=1 // pred_region
      %s173 = ssub.s32 128, 128
      %174 = vsyncadd [#allocation9], %s173
      %s175 = sshll.u32 [#allocation10], 4
      %s176 = int_to_ptr.vmem [resolvable:$true] %s175
      %181 = dma.vmem_to_hbm [thread:$0]  %s176, 128, %s5, [#allocation9], 64, 64, 4
    $region33: #{tpu_custom_call.1} parent=1 // pred_fallthru
      _
    // Predicated region
    $region34: #{tpu_custom_call.1} parent=1 // pred_check
      _
    $region35: #{tpu_custom_call.1} parent=1 // pred_check_branch
      %183 = sbr.rel (0) target = $region37
    $region36: #{tpu_custom_call.1} parent=1 // pred_region
      %184 = dma.done [#allocation4], 128
    $region37: #{tpu_custom_call.1} parent=1 // pred_fallthru
      _
    // Predicated region
    $region38: #{tpu_custom_call.1} parent=1 // pred_check
      _
    $region39: #{tpu_custom_call.1} parent=1 // pred_check_branch
      %186 = sbr.rel (0) target = $region41
    $region40: #{tpu_custom_call.1} parent=1 // pred_region
      %187 = dma.done [#allocation9], 128
    $region41: #{tpu_custom_call.1} parent=1 // pred_fallthru
      _
    // Predicated region
    $region42: #{tpu_custom_call.1} parent=1 // pred_check
      _
    $region43: #{tpu_custom_call.1} parent=1 // pred_check_branch
      %189 = sbr.rel (0) target = $region45
    $region44: #{tpu_custom_call.1} parent=1 // pred_region
      %190 = dma.done [#allocation9], 128
    $region45: #{tpu_custom_call.1} parent=1 // pred_fallthru
      _
    %191 = vsyncpa [#allocation3], 1
    %192 = vsyncpa [#allocation6], 1
    %193 = vsyncpa [#allocation4], 1
    %194 = vsyncpa [#allocation9], 1

// kernel: tpu_custom_call.1
$region0: #{tpu_custom_call.1}
  #allocation0 [shape = 'u32[]', space=smem, size = 0x4, offset = 0x4, fixed_abs, tag = 'smem constant byte address 0x4 - core index']
  #allocation1 [shape = 'u32[144,128]{1,0:T(1,128)}', space=vmem, size = 0x12000, scoped, tag = 'internal scratch']
  %s0 = inlined_call_operand.hbm [shape: f32[16,32], index: 0, kind: input, shape index: {}]
  %s1 = inlined_call_operand.hbm [shape: bf16[32,96], index: 1, kind: input, shape index: {}]
  %s2 = inlined_call_operand.vmem [shape: f32[1,96], index: 2, kind: input, shape index: {}]
  %s3 = inlined_call_operand.hbm [shape: bf16[16,32], index: 3, kind: output, shape index: {0}]
  %s4 = inlined_call_operand.hbm [shape: bf16[16,32], index: 4, kind: output, shape index: {1}]
  %s5 = inlined_call_operand.hbm [shape: bf16[16,32], index: 5, kind: output, shape index: {2}]
  %6 = xla_tuple %s3, %s4, %s5
  %s7 = sld [smem:[#allocation0]]
  $region46: #{tpu_custom_call.1} parent=0
    _
  %s9 = ssub.s32 1, %s7
  %s10 = scalar_select 0, %s9, %s7
  $region1: #{tpu_custom_call.1} parent=0
    #allocation2 [shape = 'u8[8192]{0}', space=vmem, size = 0x2000, scoped, tag = 'input window, operand 0, single buffered']
    #allocation3 [shape = 's32[1]{0}', space=sflag, size = 0x4, scoped, tag = 'scoped memory for tpu_custom_call.1']
    #allocation4 [shape = 's32[1]{0}', space=sflag, size = 0x4, scoped, tag = 'scoped memory for tpu_custom_call.1']
    #allocation5 [shape = 'u8[8192]{0}', space=vmem, size = 0x2000, scoped, tag = 'input window, operand 1, single buffered']
    #allocation6 [shape = 's32[1]{0}', space=sflag, size = 0x4, scoped, tag = 'scoped memory for tpu_custom_call.1']
    #allocation7 [shape = 'u8[4096]{0}', space=vmem, size = 0x1000, scoped, tag = 'output window, operand 0, single buffered']
    #allocation8 [shape = 'u8[4096]{0}', space=vmem, size = 0x1000, scoped, tag = 'output window, operand 1, single buffered']
    #allocation9 [shape = 's32[1]{0}', space=sflag, size = 0x4, scoped, tag = 'scoped memory for tpu_custom_call.1']
    #allocation10 [shape = 'u8[4096]{0}', space=vmem, size = 0x1000, scoped, tag = 'output window, operand 2, single buffered']
    %11 = vsyncpa [#allocation3], 0
    %12 = vsyncpa [#allocation6], 0
    %13 = vsyncpa [#allocation4], 0
    %14 = vsyncpa [#allocation9], 0
    // Predicated region
    $region2: #{tpu_custom_call.1} parent=1 // pred_check
      _
    $region3: #{tpu_custom_call.1} parent=1 // pred_check_branch
      %16 = sbr.rel (0) target = $region5
    $region4: #{tpu_custom_call.1} parent=1 // pred_region
      %s18 = ssub.s32 256, 256
      %19 = vsyncadd [#allocation3], %s18
      %s20 = sshll.u32 [#allocation2], 4
      %s21 = int_to_ptr.vmem [resolvable:$true] %s20
      %26 = dma.hbm_to_vmem [thread:$0]  %s0, 256, %s21, [#allocation3], 128, 128, 8
    $region5: #{tpu_custom_call.1} parent=1 // pred_fallthru
      _
    // Predicated region
    $region6: #{tpu_custom_call.1} parent=1 // pred_check
      _
    $region7: #{tpu_custom_call.1} parent=1 // pred_check_branch
      %28 = sbr.rel (0) target = $region9
    $region8: #{tpu_custom_call.1} parent=1 // pred_region
      %s30 = ssub.s32 256, 256
      %31 = vsyncadd [#allocation6], %s30
      %s32 = sshll.u32 [#allocation5], 4
      %s33 = int_to_ptr.vmem [resolvable:$true] %s32
      %38 = dma.hbm_to_vmem [thread:$0]  %s1, 256, %s33, [#allocation6], 64, 64, 4
    $region9: #{tpu_custom_call.1} parent=1 // pred_fallthru
      _
    // Predicated region
    $region10: #{tpu_custom_call.1} parent=1 // pred_check
      _
    $region11: #{tpu_custom_call.1} parent=1 // pred_check_branch
      %40 = sbr.rel (0) target = $region13
    $region12: #{tpu_custom_call.1} parent=1 // pred_region
      _
    $region13: #{tpu_custom_call.1} parent=1 // pred_fallthru
      _
    // Predicated region
    $region14: #{tpu_custom_call.1} parent=1 // pred_check
      _
    $region15: #{tpu_custom_call.1} parent=1 // pred_check_branch
      %42 = sbr.rel (0) target = $region17
    $region16: #{tpu_custom_call.1} parent=1 // pred_region
      %43 = dma.done [#allocation3], 256
    $region17: #{tpu_custom_call.1} parent=1 // pred_fallthru
      _
    // Predicated region
    $region18: #{tpu_custom_call.1} parent=1 // pred_check
      _
    $region19: #{tpu_custom_call.1} parent=1 // pred_check_branch
      %45 = sbr.rel (0) target = $region21
    $region20: #{tpu_custom_call.1} parent=1 // pred_region
      %46 = dma.done [#allocation6], 256
    $region21: #{tpu_custom_call.1} parent=1 // pred_fallthru
      _
    %v48 = vld [vmem:[#allocation2] sm:$0xff]
    %v49 = vld [vmem:[#allocation2 + $0x8] sm:$0xff]
    %v50 = vpack.c.bf16 %v49, %v48
    %v51 = vld [vmem:[#allocation5] sm:$0xf]
    %v52 = vld [vmem:[#allocation5 + $0x4] sm:$0xf]
    %v53 = vld [vmem:[#allocation5 + $0x8] sm:$0xf]
    %v54 = vld [vmem:[#allocation5 + $0xc] sm:$0xf]
    %v55 = vld [vmem:[%s2] sm:$0x1]
    %v57 = vlaneseq
    %v58 = vshrl.u32 %v57, 7
    %v59 = vsub.s32 0, %v58
    %v60 = vrot.slane %v55, %v59
    %v66 = vunpack.c.l.b16 %v51
    %v67 = vunpack.c.l.b16 %v52
    %v68 = vunpack.c.l.b16 %v53
    %v69 = vunpack.c.l.b16 %v54
    %v70 = vpack.c.b16 %v67, %v66
    %v71 = vpack.c.b16 %v69, %v68
    %vm74 = vcmask 261120
    %v76 = vsel %vm74, %v50, 0
    %78 = vmatprep.subr.bf16.mxu0 0
    %79 = vmatpush1.bf16.msra.mxu0 %v70
    %80 = vmatprep.subr.bf16.mxu0 0
    %81 = vmatpush1.bf16.msra.mxu0 %v71
    %82 = vmatprep.subr.bf16.mxu0 0
    %83 = vmatpush1.bf16.msra.mxu0 0
    %84 = vmatprep.subr.bf16.mxu0 0
    %85 = vmatpush1.bf16.msra.mxu0 0
    %86 = vmatprep.subr.bf16.mxu0 0
    %87 = vmatpush1.bf16.msra.mxu0 0
    %88 = vmatprep.subr.bf16.mxu0 0
    %89 = vmatpush1.bf16.msra.mxu0 0
    %90 = vmatprep.subr.bf16.mxu0 0
    %91 = vmatpush1.bf16.msra.mxu0 0
    %92 = vmatprep.subr.bf16.mxu0 0
    %93 = vmatpush1.bf16.msra.mxu0 0
    %94 = vmatprep.subr.bf16.mxu0 0
    %95 = vmatpush1.bf16.msra.mxu0 0
    %96 = vmatprep.subr.bf16.mxu0 0
    %97 = vmatpush1.bf16.msra.mxu0 0
    %98 = vmatprep.subr.bf16.mxu0 0
    %99 = vmatpush1.bf16.msra.mxu0 0
    %100 = vmatprep.subr.bf16.mxu0 0
    %101 = vmatpush1.bf16.msra.mxu0 0
    %102 = vmatprep.subr.bf16.mxu0 0
    %103 = vmatpush1.bf16.msra.mxu0 0
    %104 = vmatprep.subr.bf16.mxu0 0
    %105 = vmatpush1.bf16.msra.mxu0 0
    %106 = vmatprep.subr.bf16.mxu0 0
    %107 = vmatpush1.bf16.msra.mxu0 0
    %108 = vmatprep.subr.bf16.mxu0 0
    %109 = vmatpush1.bf16.msra.mxu0 0
    %110 = vmatprep.mubr.bf16.mxu0 0
    %111 = vmatmul.mubr.bf16.gmra.mrb[0].mxu0 %v76
    %v112 = vpop.f32.mrb[0].mxu0
    %v113 = vadd.f32 %v60, %v112
    %v114 = vpop.f32.mrb[0].mxu0
    %v115 = vpop.f32.mrb[0].mxu0
    %v116 = vadd.f32 %v60, %v115
    %v117 = vpop.f32.mrb[0].mxu0
    %118 = vdwg.mxu0
    %v119 = vpack.c.bf16 %v116, %v113
    %v121 = vunpack.c.l.b16 %v119
    %v122 = vunpack.c.h.b16 %v119
    %v123 = vpack.c.b16 %v121, %v121
    %v124 = vpack.c.b16 %v122, %v122
    %vm127 = vcmask 257024
    %128 = vst.msk [vmem:[#allocation7] sm:$0xf] %vm127, %v123
    %129 = vst.msk [vmem:[#allocation7 + $0x4] sm:$0xf] %vm127, %v124
    %130 = vrot.lane.b32.xlu0 %v123, 96
    %v131 = vpop.permute.xlu0 %130
    %132 = vrot.lane.b32.xlu0 %v124, 96
    %v133 = vpop.permute.xlu0 %132
    %136 = vst.msk [vmem:[#allocation8] sm:$0xf] %vm127, %v131
    %137 = vst.msk [vmem:[#allocation8 + $0x4] sm:$0xf] %vm127, %v133
    %138 = vrot.lane.b32.xlu0 %v123, 64
    %v139 = vpop.permute.xlu0 %138
    %140 = vrot.lane.b32.xlu0 %v124, 64
    %v141 = vpop.permute.xlu0 %140
    %144 = vst.msk [vmem:[#allocation10] sm:$0xf] %vm127, %v139
    %145 = vst.msk [vmem:[#allocation10 + $0x4] sm:$0xf] %vm127, %v141
    // Predicated region
    $region22: #{tpu_custom_call.1} parent=1 // pred_check
      _
    $region23: #{tpu_custom_call.1} parent=1 // pred_check_branch
      %147 = sbr.rel (0) target = $region25
    $region24: #{tpu_custom_call.1} parent=1 // pred_region
      %s149 = ssub.s32 128, 128
      %150 = vsyncadd [#allocation4], %s149
      %s151 = sshll.u32 [#allocation7], 4
      %s152 = int_to_ptr.vmem [resolvable:$true] %s151
      %157 = dma.vmem_to_hbm [thread:$0]  %s152, 128, %s3, [#allocation4], 64, 64, 4
    $region25: #{tpu_custom_call.1} parent=1 // pred_fallthru
      _
    // Predicated region
    $region26: #{tpu_custom_call.1} parent=1 // pred_check
      _
    $region27: #{tpu_custom_call.1} parent=1 // pred_check_branch
      %159 = sbr.rel (0) target = $region29
    $region28: #{tpu_custom_call.1} parent=1 // pred_region
      %s161 = ssub.s32 128, 128
      %162 = vsyncadd [#allocation9], %s161
      %s163 = sshll.u32 [#allocation8], 4
      %s164 = int_to_ptr.vmem [resolvable:$true] %s163
      %169 = dma.vmem_to_hbm [thread:$0]  %s164, 128, %s4, [#allocation9], 64, 64, 4
    $region29: #{tpu_custom_call.1} parent=1 // pred_fallthru
      _
    // Predicated region
    $region30: #{tpu_custom_call.1} parent=1 // pred_check
      _
    $region31: #{tpu_custom_call.1} parent=1 // pred_check_branch
      %171 = sbr.rel (0) target = $region33
    $region32: #{tpu_custom_call.1} parent=1 // pred_region
      %s173 = ssub.s32 128, 128
      %174 = vsyncadd [#allocation9], %s173
      %s175 = sshll.u32 [#allocation10], 4
      %s176 = int_to_ptr.vmem [resolvable:$true] %s175
      %181 = dma.vmem_to_hbm [thread:$0]  %s176, 128, %s5, [#allocation9], 64, 64, 4
    $region33: #{tpu_custom_call.1} parent=1 // pred_fallthru
      _
    // Predicated region
    $region34: #{tpu_custom_call.1} parent=1 // pred_check
      _
    $region35: #{tpu_custom_call.1} parent=1 // pred_check_branch
      %183 = sbr.rel (0) target = $region37
    $region36: #{tpu_custom_call.1} parent=1 // pred_region
      %184 = dma.done [#allocation4], 128
    $region37: #{tpu_custom_call.1} parent=1 // pred_fallthru
      _
    // Predicated region
    $region38: #{tpu_custom_call.1} parent=1 // pred_check
      _
    $region39: #{tpu_custom_call.1} parent=1 // pred_check_branch
      %186 = sbr.rel (0) target = $region41
    $region40: #{tpu_custom_call.1} parent=1 // pred_region
      %187 = dma.done [#allocation9], 128
    $region41: #{tpu_custom_call.1} parent=1 // pred_fallthru
      _
    // Predicated region
    $region42: #{tpu_custom_call.1} parent=1 // pred_check
      _
    $region43: #{tpu_custom_call.1} parent=1 // pred_check_branch
      %189 = sbr.rel (0) target = $region45
    $region44: #{tpu_custom_call.1} parent=1 // pred_region
      %190 = dma.done [#allocation9], 128
    $region45: #{tpu_custom_call.1} parent=1 // pred_fallthru
      _
    %191 = vsyncpa [#allocation3], 1
    %192 = vsyncpa [#allocation6], 1
    %193 = vsyncpa [#allocation4], 1
    %194 = vsyncpa [#allocation9], 1

</llo_original>
